<compile_context>
chip_gen: v5e
topology: v5e:2x2
jax: 0.10.0
libtpu: 0.0.40
codegen_flags: <defaults>
</compile_context>

<pallas_src>
import functools

import numpy as np
import jax
import jax.numpy as jnp
from jax import lax
from jax.experimental import pallas as pl
from jax.experimental.pallas import tpu as pltpu

R = 2  # upscale factor fixed by the module (nn.PixelShuffle(2))


@functools.lru_cache(maxsize=None)
def _interleave_weight(W: int, dtype):
    """One-hot (4W,4W) Q with [a|b|c|d] @ Q == [interleave(a,b) | interleave(c,d)]."""
    q = np.zeros((4 * W, 4 * W), np.float32)
    w = np.arange(W)
    q[w,         2 * w            ] = 1.0   # a -> even cols of even output row
    q[W + w,     2 * w + 1        ] = 1.0   # b -> odd  cols of even output row
    q[2 * W + w, 2 * W + 2 * w    ] = 1.0   # c -> even cols of odd  output row
    q[3 * W + w, 2 * W + 2 * w + 1] = 1.0   # d -> odd  cols of odd  output row
    return jnp.asarray(q, dtype=dtype)


def _pixel_shuffle_kernel(x_ref, q_ref, o_ref, *, precision):
    # x_ref: (4*Cc, H, W)   input planes for Cc output channels
    # q_ref: (4W, 4W)       one-hot interleave matrix
    # o_ref: (Cc, H, 4W)    row-major bytes of the (Cc, 2H, 2W) output
    n_planes, H, W = x_ref.shape
    Cc = n_planes // 4

    # Fused LHS: rows for channel c are [a_c | b_c | c_c | d_c]  -> (Cc*H, 4W)
    per_channel = []
    for c in range(Cc):
        planes = [x_ref[4 * c + k] for k in range(4)]            # each (H, W)
        per_channel.append(jnp.concatenate(planes, axis=-1))     # (H, 4W)
    lhs = per_channel[0] if Cc == 1 else jnp.concatenate(per_channel, axis=0)

    if precision is not None:                 # exact f32 fallback path
        lhs = lhs.astype(jnp.float32)

    out = lax.dot(lhs, q_ref[...], precision=precision,
                  preferred_element_type=jnp.float32)            # (Cc*H, 4W)

    for c in range(Cc):
        o_ref[c] = out[c * H:(c + 1) * H, :].astype(o_ref.dtype)


def upsample_pixel_shuffle(x, channels_per_step=8):
    """UpSample.forward: nn.PixelShuffle(2) on NCHW input."""
    B, Cin, H, W = x.shape
    assert Cin % (R * R) == 0, "input channels must be divisible by upscale_factor**2"
    Cout = Cin // (R * R)

    # Largest divisor of Cout not exceeding channels_per_step (channel batching).
    Cc = 1
    for c in range(min(Cout, channels_per_step), 0, -1):
        if Cout % c == 0:
            Cc = c
            break

    if x.dtype == jnp.bfloat16:
        # bf16 data x bf16 0/1 weights at default MXU precision is bit-exact.
        q = _interleave_weight(W, jnp.bfloat16)
        precision = None
    else:
        # f32 (or other): HIGHEST keeps the permutation bit-exact on the MXU.
        q = _interleave_weight(W, jnp.float32)
        precision = lax.Precision.HIGHEST

    kernel = functools.partial(_pixel_shuffle_kernel, precision=precision)

    y = pl.pallas_call(
        kernel,
        out_shape=jax.ShapeDtypeStruct((B, Cout, H, 4 * W), x.dtype),
        grid=(B, Cout // Cc),
        in_specs=[
            pl.BlockSpec((pl.Squeezed(), 4 * Cc, H, W), lambda b, cc: (b, cc, 0, 0)),
            pl.BlockSpec((4 * W, 4 * W), lambda b, cc: (0, 0)),
        ],
        out_specs=pl.BlockSpec((pl.Squeezed(), Cc, H, 4 * W),
                               lambda b, cc: (b, cc, 0, 0)),
        compiler_params=pltpu.CompilerParams(
            dimension_semantics=("parallel", "parallel")),
    )(x, q)

    # Contiguous (free) reshape: (B, Cout, H, 4W) -> (B, Cout, 2H, 2W).
    return y.reshape(B, Cout, R * H, R * W)


def _reference_pixel_shuffle(x):
    B, Cin, H, W = x.shape
    Cout = Cin // (R * R)
    x6 = x.reshape(B, Cout, R, R, H, W)
    return x6.transpose(0, 1, 4, 2, 5, 3).reshape(B, Cout, H * R, W * R)


if __name__ == "__main__":
    key = jax.random.PRNGKey(0)
    B, Cin, H, W = 2, 16, 16, 32          # Cout=4; 4W=128 -> lane-dense output
    x32 = jax.random.normal(key, (B, Cin, H, W), dtype=jnp.float32)

    # bf16 fast path (default-precision MXU, bit-exact for a 0/1 permutation).
    xbf = x32.astype(jnp.bfloat16)
    y_bf = jax.block_until_ready(upsample_pixel_shuffle(xbf))
    ref_bf = _reference_pixel_shuffle(xbf)
    assert y_bf.shape == (B, Cin // 4, R * H, R * W), y_bf.shape
    assert np.array_equal(np.asarray(y_bf, dtype=np.float32),
                          np.asarray(ref_bf, dtype=np.float32))

    # f32 exact path.
    y32 = jax.block_until_ready(upsample_pixel_shuffle(x32))
    ref32 = _reference_pixel_shuffle(x32)
    assert y32.shape == (B, Cin // 4, R * H, R * W), y32.shape
    assert np.allclose(np.asarray(y32), np.asarray(ref32), rtol=1e-6, atol=1e-6)

    print("KERNEL_OK")
</pallas_src>

<mosaic_0001>
module attributes {stable_mosaic.version = 11 : i64} {
  func.func @_pixel_shuffle_kernel(%arg0: i32, %arg1: i32, %arg2: memref<1x16x16x32xbf16, #tpu.memory_space<vmem>>, %arg3: memref<128x128xbf16, #tpu.memory_space<vmem>>, %arg4: memref<1x4x16x128xbf16, #tpu.memory_space<vmem>>) attributes {dimension_semantics = [#tpu.dimension_semantics<parallel>, #tpu.dimension_semantics<parallel>], iteration_bounds = array<i64: 2, 1>, scalar_prefetch = 0 : i64, scratch_operands = 0 : i64, tpu.core_type = #tpu.core_type<tc>, window_params = [{transform_indices = @transform_0, window_bounds = array<i64: 1, 16, 16, 32>}, {pipeline_mode = #tpu.pipeline_mode<synchronous>, transform_indices = @transform_1, window_bounds = array<i64: 128, 128>}, {transform_indices = @transform_2, window_bounds = array<i64: 1, 4, 16, 128>}]} {
    %c0 = arith.constant 0 : index
    %c0_0 = arith.constant 0 : index
    %c0_1 = arith.constant 0 : index
    %c0_2 = arith.constant 0 : index
    %0 = vector.load %arg2[%c0, %c0_0, %c0_1, %c0_2] : memref<1x16x16x32xbf16, #tpu.memory_space<vmem>>, vector<1x1x16x32xbf16>
    %1 = vector.shape_cast %0 : vector<1x1x16x32xbf16> to vector<16x32xbf16>
    %c0_3 = arith.constant 0 : index
    %c1 = arith.constant 1 : index
    %c0_4 = arith.constant 0 : index
    %c0_5 = arith.constant 0 : index
    %2 = vector.load %arg2[%c0_3, %c1, %c0_4, %c0_5] : memref<1x16x16x32xbf16, #tpu.memory_space<vmem>>, vector<1x1x16x32xbf16>
    %3 = vector.shape_cast %2 : vector<1x1x16x32xbf16> to vector<16x32xbf16>
    %c0_6 = arith.constant 0 : index
    %c2 = arith.constant 2 : index
    %c0_7 = arith.constant 0 : index
    %c0_8 = arith.constant 0 : index
    %4 = vector.load %arg2[%c0_6, %c2, %c0_7, %c0_8] : memref<1x16x16x32xbf16, #tpu.memory_space<vmem>>, vector<1x1x16x32xbf16>
    %5 = vector.shape_cast %4 : vector<1x1x16x32xbf16> to vector<16x32xbf16>
    %c0_9 = arith.constant 0 : index
    %c3 = arith.constant 3 : index
    %c0_10 = arith.constant 0 : index
    %c0_11 = arith.constant 0 : index
    %6 = vector.load %arg2[%c0_9, %c3, %c0_10, %c0_11] : memref<1x16x16x32xbf16, #tpu.memory_space<vmem>>, vector<1x1x16x32xbf16>
    %7 = vector.shape_cast %6 : vector<1x1x16x32xbf16> to vector<16x32xbf16>
    %8 = tpu.concatenate %1, %3, %5, %7 in 1 : vector<16x32xbf16>, vector<16x32xbf16>, vector<16x32xbf16>, vector<16x32xbf16> -> vector<16x128xbf16>
    %c0_12 = arith.constant 0 : index
    %c4 = arith.constant 4 : index
    %c0_13 = arith.constant 0 : index
    %c0_14 = arith.constant 0 : index
    %9 = vector.load %arg2[%c0_12, %c4, %c0_13, %c0_14] : memref<1x16x16x32xbf16, #tpu.memory_space<vmem>>, vector<1x1x16x32xbf16>
    %10 = vector.shape_cast %9 : vector<1x1x16x32xbf16> to vector<16x32xbf16>
    %c0_15 = arith.constant 0 : index
    %c5 = arith.constant 5 : index
    %c0_16 = arith.constant 0 : index
    %c0_17 = arith.constant 0 : index
    %11 = vector.load %arg2[%c0_15, %c5, %c0_16, %c0_17] : memref<1x16x16x32xbf16, #tpu.memory_space<vmem>>, vector<1x1x16x32xbf16>
    %12 = vector.shape_cast %11 : vector<1x1x16x32xbf16> to vector<16x32xbf16>
    %c0_18 = arith.constant 0 : index
    %c6 = arith.constant 6 : index
    %c0_19 = arith.constant 0 : index
    %c0_20 = arith.constant 0 : index
    %13 = vector.load %arg2[%c0_18, %c6, %c0_19, %c0_20] : memref<1x16x16x32xbf16, #tpu.memory_space<vmem>>, vector<1x1x16x32xbf16>
    %14 = vector.shape_cast %13 : vector<1x1x16x32xbf16> to vector<16x32xbf16>
    %c0_21 = arith.constant 0 : index
    %c7 = arith.constant 7 : index
    %c0_22 = arith.constant 0 : index
    %c0_23 = arith.constant 0 : index
    %15 = vector.load %arg2[%c0_21, %c7, %c0_22, %c0_23] : memref<1x16x16x32xbf16, #tpu.memory_space<vmem>>, vector<1x1x16x32xbf16>
    %16 = vector.shape_cast %15 : vector<1x1x16x32xbf16> to vector<16x32xbf16>
    %17 = tpu.concatenate %10, %12, %14, %16 in 1 : vector<16x32xbf16>, vector<16x32xbf16>, vector<16x32xbf16>, vector<16x32xbf16> -> vector<16x128xbf16>
    %c0_24 = arith.constant 0 : index
    %c8 = arith.constant 8 : index
    %c0_25 = arith.constant 0 : index
    %c0_26 = arith.constant 0 : index
    %18 = vector.load %arg2[%c0_24, %c8, %c0_25, %c0_26] : memref<1x16x16x32xbf16, #tpu.memory_space<vmem>>, vector<1x1x16x32xbf16>
    %19 = vector.shape_cast %18 : vector<1x1x16x32xbf16> to vector<16x32xbf16>
    %c0_27 = arith.constant 0 : index
    %c9 = arith.constant 9 : index
    %c0_28 = arith.constant 0 : index
    %c0_29 = arith.constant 0 : index
    %20 = vector.load %arg2[%c0_27, %c9, %c0_28, %c0_29] : memref<1x16x16x32xbf16, #tpu.memory_space<vmem>>, vector<1x1x16x32xbf16>
    %21 = vector.shape_cast %20 : vector<1x1x16x32xbf16> to vector<16x32xbf16>
    %c0_30 = arith.constant 0 : index
    %c10 = arith.constant 10 : index
    %c0_31 = arith.constant 0 : index
    %c0_32 = arith.constant 0 : index
    %22 = vector.load %arg2[%c0_30, %c10, %c0_31, %c0_32] : memref<1x16x16x32xbf16, #tpu.memory_space<vmem>>, vector<1x1x16x32xbf16>
    %23 = vector.shape_cast %22 : vector<1x1x16x32xbf16> to vector<16x32xbf16>
    %c0_33 = arith.constant 0 : index
    %c11 = arith.constant 11 : index
    %c0_34 = arith.constant 0 : index
    %c0_35 = arith.constant 0 : index
    %24 = vector.load %arg2[%c0_33, %c11, %c0_34, %c0_35] : memref<1x16x16x32xbf16, #tpu.memory_space<vmem>>, vector<1x1x16x32xbf16>
    %25 = vector.shape_cast %24 : vector<1x1x16x32xbf16> to vector<16x32xbf16>
    %26 = tpu.concatenate %19, %21, %23, %25 in 1 : vector<16x32xbf16>, vector<16x32xbf16>, vector<16x32xbf16>, vector<16x32xbf16> -> vector<16x128xbf16>
    %c0_36 = arith.constant 0 : index
    %c12 = arith.constant 12 : index
    %c0_37 = arith.constant 0 : index
    %c0_38 = arith.constant 0 : index
    %27 = vector.load %arg2[%c0_36, %c12, %c0_37, %c0_38] : memref<1x16x16x32xbf16, #tpu.memory_space<vmem>>, vector<1x1x16x32xbf16>
    %28 = vector.shape_cast %27 : vector<1x1x16x32xbf16> to vector<16x32xbf16>
    %c0_39 = arith.constant 0 : index
    %c13 = arith.constant 13 : index
    %c0_40 = arith.constant 0 : index
    %c0_41 = arith.constant 0 : index
    %29 = vector.load %arg2[%c0_39, %c13, %c0_40, %c0_41] : memref<1x16x16x32xbf16, #tpu.memory_space<vmem>>, vector<1x1x16x32xbf16>
    %30 = vector.shape_cast %29 : vector<1x1x16x32xbf16> to vector<16x32xbf16>
    %c0_42 = arith.constant 0 : index
    %c14 = arith.constant 14 : index
    %c0_43 = arith.constant 0 : index
    %c0_44 = arith.constant 0 : index
    %31 = vector.load %arg2[%c0_42, %c14, %c0_43, %c0_44] : memref<1x16x16x32xbf16, #tpu.memory_space<vmem>>, vector<1x1x16x32xbf16>
    %32 = vector.shape_cast %31 : vector<1x1x16x32xbf16> to vector<16x32xbf16>
    %c0_45 = arith.constant 0 : index
    %c15 = arith.constant 15 : index
    %c0_46 = arith.constant 0 : index
    %c0_47 = arith.constant 0 : index
    %33 = vector.load %arg2[%c0_45, %c15, %c0_46, %c0_47] : memref<1x16x16x32xbf16, #tpu.memory_space<vmem>>, vector<1x1x16x32xbf16>
    %34 = vector.shape_cast %33 : vector<1x1x16x32xbf16> to vector<16x32xbf16>
    %35 = tpu.concatenate %28, %30, %32, %34 in 1 : vector<16x32xbf16>, vector<16x32xbf16>, vector<16x32xbf16>, vector<16x32xbf16> -> vector<16x128xbf16>
    %36 = tpu.concatenate %8, %17, %26, %35 in 0 : vector<16x128xbf16>, vector<16x128xbf16>, vector<16x128xbf16>, vector<16x128xbf16> -> vector<64x128xbf16>
    %c0_48 = arith.constant 0 : index
    %c0_49 = arith.constant 0 : index
    %37 = vector.load %arg3[%c0_48, %c0_49] : memref<128x128xbf16, #tpu.memory_space<vmem>>, vector<128x128xbf16>
    %cst = arith.constant dense<0.000000e+00> : vector<64x128xf32>
    %38 = tpu.matmul %36, %37, %cst {dimension_numbers = #tpu.dot_dimension_numbers<[1], [0], [0], [1], [0, 0, 1, 1], [], []>} : vector<64x128xbf16>, vector<128x128xbf16>, vector<64x128xf32> -> vector<64x128xf32>
    %39 = vector.extract_strided_slice %38 {offsets = [0, 0], sizes = [16, 128], strides = [1, 1]} : vector<64x128xf32> to vector<16x128xf32>
    %40 = arith.truncf %39 : vector<16x128xf32> to vector<16x128xbf16>
    %c0_50 = arith.constant 0 : index
    %c0_51 = arith.constant 0 : index
    %c0_52 = arith.constant 0 : index
    %c0_53 = arith.constant 0 : index
    %41 = vector.load %arg4[%c0_50, %c0_51, %c0_52, %c0_53] : memref<1x4x16x128xbf16, #tpu.memory_space<vmem>>, vector<1x1x16x128xbf16>
    %42 = vector.shape_cast %41 : vector<1x1x16x128xbf16> to vector<16x128xbf16>
    %43 = vector.shape_cast %40 : vector<16x128xbf16> to vector<1x1x16x128xbf16>
    tpu.vector_store %arg4[%c0_50, %c0_51, %c0_52, %c0_53], %43 {strides = array<i32>} : memref<1x4x16x128xbf16, #tpu.memory_space<vmem>>, vector<1x1x16x128xbf16>,
    %44 = vector.extract_strided_slice %38 {offsets = [16, 0], sizes = [16, 128], strides = [1, 1]} : vector<64x128xf32> to vector<16x128xf32>
    %45 = arith.truncf %44 : vector<16x128xf32> to vector<16x128xbf16>
    %c0_54 = arith.constant 0 : index
    %c1_55 = arith.constant 1 : index
    %c0_56 = arith.constant 0 : index
    %c0_57 = arith.constant 0 : index
    %46 = vector.load %arg4[%c0_54, %c1_55, %c0_56, %c0_57] : memref<1x4x16x128xbf16, #tpu.memory_space<vmem>>, vector<1x1x16x128xbf16>
    %47 = vector.shape_cast %46 : vector<1x1x16x128xbf16> to vector<16x128xbf16>
    %48 = vector.shape_cast %45 : vector<16x128xbf16> to vector<1x1x16x128xbf16>
    tpu.vector_store %arg4[%c0_54, %c1_55, %c0_56, %c0_57], %48 {strides = array<i32>} : memref<1x4x16x128xbf16, #tpu.memory_space<vmem>>, vector<1x1x16x128xbf16>,
    %49 = vector.extract_strided_slice %38 {offsets = [32, 0], sizes = [16, 128], strides = [1, 1]} : vector<64x128xf32> to vector<16x128xf32>
    %50 = arith.truncf %49 : vector<16x128xf32> to vector<16x128xbf16>
    %c0_58 = arith.constant 0 : index
    %c2_59 = arith.constant 2 : index
    %c0_60 = arith.constant 0 : index
    %c0_61 = arith.constant 0 : index
    %51 = vector.load %arg4[%c0_58, %c2_59, %c0_60, %c0_61] : memref<1x4x16x128xbf16, #tpu.memory_space<vmem>>, vector<1x1x16x128xbf16>
    %52 = vector.shape_cast %51 : vector<1x1x16x128xbf16> to vector<16x128xbf16>
    %53 = vector.shape_cast %50 : vector<16x128xbf16> to vector<1x1x16x128xbf16>
    tpu.vector_store %arg4[%c0_58, %c2_59, %c0_60, %c0_61], %53 {strides = array<i32>} : memref<1x4x16x128xbf16, #tpu.memory_space<vmem>>, vector<1x1x16x128xbf16>,
    %54 = vector.extract_strided_slice %38 {offsets = [48, 0], sizes = [16, 128], strides = [1, 1]} : vector<64x128xf32> to vector<16x128xf32>
    %55 = arith.truncf %54 : vector<16x128xf32> to vector<16x128xbf16>
    %c0_62 = arith.constant 0 : index
    %c3_63 = arith.constant 3 : index
    %c0_64 = arith.constant 0 : index
    %c0_65 = arith.constant 0 : index
    %56 = vector.load %arg4[%c0_62, %c3_63, %c0_64, %c0_65] : memref<1x4x16x128xbf16, #tpu.memory_space<vmem>>, vector<1x1x16x128xbf16>
    %57 = vector.shape_cast %56 : vector<1x1x16x128xbf16> to vector<16x128xbf16>
    %58 = vector.shape_cast %55 : vector<16x128xbf16> to vector<1x1x16x128xbf16>
    tpu.vector_store %arg4[%c0_62, %c3_63, %c0_64, %c0_65], %58 {strides = array<i32>} : memref<1x4x16x128xbf16, #tpu.memory_space<vmem>>, vector<1x1x16x128xbf16>,
    return
  }
  func.func @transform_0(%arg0: i32, %arg1: i32) -> (i32, i32, i32, i32) {
    %c0_i32 = arith.constant 0 : i32
    %c0_i32_0 = arith.constant 0 : i32
    %c0_i32_1 = arith.constant 0 : i32
    return %arg0, %arg1, %c0_i32, %c0_i32_0 : i32, i32, i32, i32
  }
  func.func @transform_1(%arg0: i32, %arg1: i32) -> (i32, i32) {
    %c0_i32 = arith.constant 0 : i32
    %c0_i32_0 = arith.constant 0 : i32
    %c0_i32_1 = arith.constant 0 : i32
    return %c0_i32, %c0_i32_0 : i32, i32
  }
  func.func @transform_2(%arg0: i32, %arg1: i32) -> (i32, i32, i32, i32) {
    %c0_i32 = arith.constant 0 : i32
    %c0_i32_0 = arith.constant 0 : i32
    %c0_i32_1 = arith.constant 0 : i32
    return %arg0, %arg1, %c0_i32, %c0_i32_0 : i32, i32, i32, i32
  }
}

</mosaic_0001>

<llo_original>
// kernel: tpu_custom_call.1
$region0: #{tpu_custom_call.1}
  #allocation0 [shape = 'u32[]', space=smem, size = 0x4, offset = 0x4, fixed_abs, tag = 'smem constant byte address 0x4 - core index']
  #allocation1 [shape = 'u32[72,128]{1,0:T(1,128)}', space=vmem, size = 0x9000, scoped, tag = 'internal scratch']
  %s0 = inlined_call_operand.hbm [shape: bf16[2,16,16,32], index: 0, kind: input, shape index: {}]
  %s1 = inlined_call_operand.hbm [shape: bf16[128,128], index: 1, kind: input, shape index: {}]
  %s2 = inlined_call_operand.hbm [shape: bf16[2,4,16,128], index: 2, kind: output, shape index: {}]
  %s3 = sld [smem:[#allocation0]]
  $region49: #{tpu_custom_call.1} parent=0
    _
  %s5 = ssub.s32 1, %s3
  %s6 = scalar_select 0, %s5, %s3
  $region1: #{tpu_custom_call.1} parent=0
    #allocation2 [shape = 'u8[131072]{0}', space=vmem, size = 0x20000, scoped, tag = 'input window, operand 0']
    #allocation3 [shape = 's32[2]{0}', space=sflag, size = 0x8, scoped, tag = 'scoped memory for tpu_custom_call.1']
    #allocation4 [shape = 's32[2]{0}', space=sflag, size = 0x8, scoped, tag = 'scoped memory for tpu_custom_call.1']
    #allocation5 [shape = 'u8[32768]{0}', space=vmem, size = 0x8000, scoped, tag = 'input window, operand 1, single buffered']
    #allocation6 [shape = 's32[1]{0}', space=sflag, size = 0x4, scoped, tag = 'scoped memory for tpu_custom_call.1']
    #allocation7 [shape = 'u8[32768]{0}', space=vmem, size = 0x8000, scoped, tag = 'output window, operand 0']
    %7 = vsyncpa [#allocation3], 0
    %s8 = scalar_lea.sflag [#allocation3], 1
    %9 = vsyncpa %s8, 0
    %10 = vsyncpa [#allocation6], 0
    %11 = vsyncpa [#allocation4], 0
    %s12 = scalar_lea.sflag [#allocation4], 1
    %13 = vsyncpa %s12, 0
    loop: start=0, step=1, limit=4
    $region2: #{tpu_custom_call.1} parent=1 // loop_pre_header
      _
    $region3: #{tpu_custom_call.1} parent=1 // loop_header
      %s15 = sphi 0, %s19
      %p16 = scmp.ge.s32.totalorder %s15, 4
      %s22 = sphi 0, %s34
      %s23 = sphi 0, %s30
      %s24 = sphi 0, %s22
      %s25 = sphi 0, %s23
      %s26 = sphi 0, %s24
      %s27 = sphi 0, %s25
      %s39 = sphi 0, %s41
      %s42 = sphi 0, %s39
      %s43 = sphi 0, %s42
      %s59 = sphi 0, %s43
      %s63 = sphi 0, %s63
      %s65 = sphi 0, %s63
      %s66 = sphi 0, %s65
      %s80 = sphi 0, %s66
      %s88 = sphi 0, %s90
      %s91 = sphi 0, %s88
      %s92 = sphi 0, %s91
      %s108 = sphi 0, %s92
    $region4: #{tpu_custom_call.1} parent=1 // loop_header_branch
      %18 = sbr.rel (%p16) target = $region8
    $region5: #{tpu_custom_call.1} parent=1 // loop_body
      %s20 = ssub.s32 %s15, 1
      %s21 = ssub.s32 %s15, 2
      %s28 = sadd.s32 1, %s23
      %p29 = scmp.ge.s32.totalorder %s28, 1
      %s30 = scalar_select %p29, 0, %s28
      %s31 = sadd.s32 1, %s22
      %s32 = scalar_select %p29, %s31, %s22
      %p33 = scmp.ge.s32.totalorder %s32, 2
      %s34 = scalar_select %p33, 0, %s32
      %s35 = ssub.s32 %s22, %s34
      %s36 = ssub.s32 %s23, %s30
      %s37 = sor.u32 %s35, %s36
      %p38 = scmp.eq.s32.totalorder %s37, 0
      %s40 = sadd.s32 %s39, 1
      %s41 = scalar_select %p38, %s39, %s40
      %p44 = pneg %p38
      %p45 = scmp.eq.s32.totalorder %s15, 1
      %p46 = por %p44, %p45
      %p47 = scmp.ne.s32.totalorder %s39, %s42
      %p48 = scmp.eq.s32.totalorder %s15, 0
      %p49 = por %p47, %p48
      %p50 = scmp.ne.s32.totalorder %s39, %s42
      %p51 = scmp.eq.s32.totalorder %s20, 1
      %p52 = por %p50, %p51
      %p53 = scmp.ne.s32.totalorder %s42, %s43
      %p54 = scmp.eq.s32.totalorder %s20, 0
      %p55 = por %p53, %p54
      %p56 = scmp.ne.s32.totalorder %s42, %s43
      %p57 = scmp.eq.s32.totalorder %s21, 1
      %p58 = por %p56, %p57
      %p60 = scmp.ne.s32.totalorder %s43, %s59
      %p61 = scmp.eq.s32.totalorder %s21, 0
      %p62 = por %p60, %p61
      %s64 = sadd.s32 %s63, 1
      %p67 = scmp.eq.s32.totalorder %s15, 1
      %p68 = scmp.ne.s32.totalorder %s63, %s65
      %p69 = scmp.eq.s32.totalorder %s15, 0
      %p70 = por %p68, %p69
      %p71 = scmp.ne.s32.totalorder %s63, %s65
      %p72 = scmp.eq.s32.totalorder %s20, 1
      %p73 = por %p71, %p72
      %p74 = scmp.ne.s32.totalorder %s65, %s66
      %p75 = scmp.eq.s32.totalorder %s20, 0
      %p76 = por %p74, %p75
      %p77 = scmp.ne.s32.totalorder %s65, %s66
      %p78 = scmp.eq.s32.totalorder %s21, 1
      %p79 = por %p77, %p78
      %p81 = scmp.ne.s32.totalorder %s66, %s80
      %p82 = scmp.eq.s32.totalorder %s21, 0
      %p83 = por %p81, %p82
      %s84 = ssub.s32 %s22, %s34
      %s85 = ssub.s32 %s23, %s30
      %s86 = sor.u32 %s84, %s85
      %p87 = scmp.eq.s32.totalorder %s86, 0
      %s89 = sadd.s32 %s88, 1
      %s90 = scalar_select %p87, %s88, %s89
      %p93 = pneg %p87
      %p94 = scmp.eq.s32.totalorder %s15, 1
      %p95 = por %p93, %p94
      %p96 = scmp.ne.s32.totalorder %s88, %s91
      %p97 = scmp.eq.s32.totalorder %s15, 0
      %p98 = por %p96, %p97
      %p99 = scmp.ne.s32.totalorder %s88, %s91
      %p100 = scmp.eq.s32.totalorder %s20, 1
      %p101 = por %p99, %p100
      %p102 = scmp.ne.s32.totalorder %s91, %s92
      %p103 = scmp.eq.s32.totalorder %s20, 0
      %p104 = por %p102, %p103
      %p105 = scmp.ne.s32.totalorder %s91, %s92
      %p106 = scmp.eq.s32.totalorder %s21, 1
      %p107 = por %p105, %p106
      %p109 = scmp.ne.s32.totalorder %s92, %s108
      %p110 = scmp.eq.s32.totalorder %s21, 0
      %p111 = por %p109, %p110
      %p112 = scmp.le.s32.totalorder 1, %s15
      %p113 = scmp.lt.s32.totalorder %s15, 3
      %p114 = pnand %p112, %p113
      %p115 = pneg %p114
      // Predicated region
      $region9: #{tpu_custom_call.1} parent=5 // pred_check
        _
      $region10: #{tpu_custom_call.1} parent=5 // pred_check_branch
        %117 = sbr.rel (%p114) target = $region12
      $region11: #{tpu_custom_call.1} parent=5 // pred_region
        %s118 = ssub.s32 %s15, 1
        // Predicated region
        $region13: #{tpu_custom_call.1} parent=11 // pred_check
          %p119 = pneg %p76
        $region14: #{tpu_custom_call.1} parent=11 // pred_check_branch
          %121 = sbr.rel (%p119) target = $region16
        $region15: #{tpu_custom_call.1} parent=11 // pred_region
          %123 = vsyncadd [#allocation6], 0
          %s124 = sshll.u32 %s1, 4
          %s125 = int_to_ptr.hbm [resolvable:$true] %s124
          %s126 = sshll.u32 [#allocation5], 4
          %s127 = int_to_ptr.vmem [resolvable:$true] %s126
          %132 = dma.hbm_to_vmem [thread:$0]  %s125, 1024, %s127, [#allocation6], 64, 64, 4
        $region16: #{tpu_custom_call.1} parent=11 // pred_fallthru
          _
      $region12: #{tpu_custom_call.1} parent=5 // pred_fallthru
        _
      %p133 = scmp.lt.s32.totalorder %s15, 2
      // Predicated region
      $region17: #{tpu_custom_call.1} parent=5 // pred_check
        %p134 = pneg %p133
      $region18: #{tpu_custom_call.1} parent=5 // pred_check_branch
        %136 = sbr.rel (%p134) target = $region20
      $region19: #{tpu_custom_call.1} parent=5 // pred_region
        // Predicated region
        $region21: #{tpu_custom_call.1} parent=19 // pred_check
          %p137 = pneg %p49
        $region22: #{tpu_custom_call.1} parent=19 // pred_check_branch
          %139 = sbr.rel (%p137) target = $region24
        $region23: #{tpu_custom_call.1} parent=19 // pred_region
          %s140 = sand.u32 %s39, 1
          %s141 = scalar_lea.sflag [#allocation3], %s140
          %s142 = sand.u32 %s39, 1
          %s143 = smul.addr %s142, 128
          %s144 = scalar_lea.vmem [#allocation2], %s143
          %s145 = smul.u32 16, %s23
          %147 = vsyncadd %s141, 0
          %s148 = smul.addr %s145, 2
          %s149 = smul.addr %s22, 32
          %s150 = sadd.s32 %s148, %s149
          %s151 = smul.addr %s150, 4
          %s152 = scalar_lea.hbm %s0, %s151
          %s153 = sshll.u32 %s152, 4
          %s154 = int_to_ptr.hbm [resolvable:$true] %s153
          %s155 = sshll.u32 %s144, 4
          %s156 = int_to_ptr.vmem [resolvable:$true] %s155
          %161 = dma.hbm_to_vmem [thread:$0]  %s154, 2048, %s156, %s141, 64, 64, 4
        $region24: #{tpu_custom_call.1} parent=19 // pred_fallthru
          _
      $region20: #{tpu_custom_call.1} parent=5 // pred_fallthru
        _
      %p162 = scmp.le.s32.totalorder 1, %s15
      %p163 = scmp.lt.s32.totalorder %s15, 3
      %p164 = pnand %p162, %p163
      %p165 = pneg %p164
      // Predicated region
      $region25: #{tpu_custom_call.1} parent=5 // pred_check
        _
      $region26: #{tpu_custom_call.1} parent=5 // pred_check_branch
        %167 = sbr.rel (%p164) target = $region28
      $region27: #{tpu_custom_call.1} parent=5 // pred_region
        %s168 = ssub.s32 %s15, 1
        %s169 = sand.u32 %s42, 1
        %s170 = scalar_lea.sflag [#allocation3], %s169
        %s171 = sand.u32 %s42, 1
        %s172 = smul.addr %s171, 128
        %s173 = scalar_lea.vmem [#allocation2], %s172
        // Predicated region
        $region29: #{tpu_custom_call.1} parent=27 // pred_check
          %p174 = pneg %p55
        $region30: #{tpu_custom_call.1} parent=27 // pred_check_branch
          %176 = sbr.rel (%p174) target = $region32
        $region31: #{tpu_custom_call.1} parent=27 // pred_region
          %178 = dma.done %s170, 2048
        $region32: #{tpu_custom_call.1} parent=27 // pred_fallthru
          _
        // Predicated region
        $region33: #{tpu_custom_call.1} parent=27 // pred_check
          %p179 = pneg %p76
        $region34: #{tpu_custom_call.1} parent=27 // pred_check_branch
          %181 = sbr.rel (%p179) target = $region36
        $region35: #{tpu_custom_call.1} parent=27 // pred_region
          %183 = dma.done [#allocation6], 1024
        $region36: #{tpu_custom_call.1} parent=27 // pred_fallthru
          _
        %s184 = sand.u32 %s42, 1
        %s185 = scalar_lea.sflag [#allocation3], %s184
        %s186 = sand.u32 %s42, 1
        %s187 = smul.addr %s186, 128
        %s188 = scalar_lea.vmem [#allocation2], %s187
        %p189 = pneg %p55
        %p190 = pneg %p52
        %p191 = pneg %p76
        %p192 = pneg %p73
        %p193 = pneg %p104
        %p194 = pneg %p101
        %s195 = sand.u32 %s91, 1
        %s196 = scalar_lea.sflag [#allocation4], %s195
        %s197 = sand.u32 %s91, 1
        %s198 = smul.addr %s197, 32
        %s199 = scalar_lea.vmem [#allocation7], %s198
        %s200 = smul.u32 16, %s25
        %s201 = smul.u32 4, %s25
        %v202 = vld [vmem:[%s173] sm:$0xf]
        %v203 = vld [vmem:[%s173 + $0x4] sm:$0xf]
        %s204 = scalar_lea.vmem %s173, 8 [#allocation2]
        %v205 = vld [vmem:[%s204] sm:$0xf]
        %v206 = vld [vmem:[%s204 + $0x4] sm:$0xf]
        %s207 = scalar_lea.vmem %s173, 16 [#allocation2]
        %v208 = vld [vmem:[%s207] sm:$0xf]
        %v209 = vld [vmem:[%s207 + $0x4] sm:$0xf]
        %s210 = scalar_lea.vmem %s173, 24 [#allocation2]
        %v211 = vld [vmem:[%s210] sm:$0xf]
        %v212 = vld [vmem:[%s210 + $0x4] sm:$0xf]
        %v215 = vunpack.c.l.b16 %v202
        %v216 = vunpack.c.l.b16 %v203
        %v217 = vpack.c.b16 %v216, %v215
        %v220 = vunpack.c.l.b16 %v205
        %v221 = vunpack.c.l.b16 %v206
        %v222 = vpack.c.b16 %v221, %v220
        %223 = vrot.lane.b32.xlu0 %v222, 32
        %v224 = vpop.permute.xlu0 %223
        %v227 = vunpack.c.l.b16 %v208
        %v228 = vunpack.c.l.b16 %v209
        %v229 = vpack.c.b16 %v228, %v227
        %230 = vrot.lane.b32.xlu0 %v229, 64
        %v231 = vpop.permute.xlu0 %230
        %v234 = vunpack.c.l.b16 %v211
        %v235 = vunpack.c.l.b16 %v212
        %v236 = vpack.c.b16 %v235, %v234
        %237 = vrot.lane.b32.xlu0 %v236, 96
        %v238 = vpop.permute.xlu0 %237
        %vm239 = vcmask 261120
        %v242 = vsel %vm239, %v217, %v224
        %vm243 = vcmask 523264
        %v245 = vsel %vm243, %v242, %v231
        %vm246 = vcmask 785408
        %v248 = vsel %vm246, %v245, %v238
        %s250 = scalar_lea.vmem %s173, 32 [#allocation2]
        %v251 = vld [vmem:[%s250] sm:$0xf]
        %v252 = vld [vmem:[%s250 + $0x4] sm:$0xf]
        %s253 = scalar_lea.vmem %s173, 40 [#allocation2]
        %v254 = vld [vmem:[%s253] sm:$0xf]
        %v255 = vld [vmem:[%s253 + $0x4] sm:$0xf]
        %s256 = scalar_lea.vmem %s173, 48 [#allocation2]
        %v257 = vld [vmem:[%s256] sm:$0xf]
        %v258 = vld [vmem:[%s256 + $0x4] sm:$0xf]
        %s259 = scalar_lea.vmem %s173, 56 [#allocation2]
        %v260 = vld [vmem:[%s259] sm:$0xf]
        %v261 = vld [vmem:[%s259 + $0x4] sm:$0xf]
        %v264 = vunpack.c.l.b16 %v251
        %v265 = vunpack.c.l.b16 %v252
        %v266 = vpack.c.b16 %v265, %v264
        %v269 = vunpack.c.l.b16 %v254
        %v270 = vunpack.c.l.b16 %v255
        %v271 = vpack.c.b16 %v270, %v269
        %272 = vrot.lane.b32.xlu0 %v271, 32
        %v273 = vpop.permute.xlu0 %272
        %v276 = vunpack.c.l.b16 %v257
        %v277 = vunpack.c.l.b16 %v258
        %v278 = vpack.c.b16 %v277, %v276
        %279 = vrot.lane.b32.xlu0 %v278, 64
        %v280 = vpop.permute.xlu0 %279
        %v283 = vunpack.c.l.b16 %v260
        %v284 = vunpack.c.l.b16 %v261
        %v285 = vpack.c.b16 %v284, %v283
        %286 = vrot.lane.b32.xlu0 %v285, 96
        %v287 = vpop.permute.xlu0 %286
        %v290 = vsel %vm239, %v266, %v273
        %v292 = vsel %vm243, %v290, %v280
        %v294 = vsel %vm246, %v292, %v287
        %s296 = scalar_lea.vmem %s173, 64 [#allocation2]
        %v297 = vld [vmem:[%s296] sm:$0xf]
        %v298 = vld [vmem:[%s296 + $0x4] sm:$0xf]
        %s299 = scalar_lea.vmem %s173, 72 [#allocation2]
        %v300 = vld [vmem:[%s299] sm:$0xf]
        %v301 = vld [vmem:[%s299 + $0x4] sm:$0xf]
        %s302 = scalar_lea.vmem %s173, 80 [#allocation2]
        %v303 = vld [vmem:[%s302] sm:$0xf]
        %v304 = vld [vmem:[%s302 + $0x4] sm:$0xf]
        %s305 = scalar_lea.vmem %s173, 88 [#allocation2]
        %v306 = vld [vmem:[%s305] sm:$0xf]
        %v307 = vld [vmem:[%s305 + $0x4] sm:$0xf]
        %v310 = vunpack.c.l.b16 %v297
        %v311 = vunpack.c.l.b16 %v298
        %v312 = vpack.c.b16 %v311, %v310
        %v315 = vunpack.c.l.b16 %v300
        %v316 = vunpack.c.l.b16 %v301
        %v317 = vpack.c.b16 %v316, %v315
        %318 = vrot.lane.b32.xlu0 %v317, 32
        %v319 = vpop.permute.xlu0 %318
        %v322 = vunpack.c.l.b16 %v303
        %v323 = vunpack.c.l.b16 %v304
        %v324 = vpack.c.b16 %v323, %v322
        %325 = vrot.lane.b32.xlu0 %v324, 64
        %v326 = vpop.permute.xlu0 %325
        %v329 = vunpack.c.l.b16 %v306
        %v330 = vunpack.c.l.b16 %v307
        %v331 = vpack.c.b16 %v330, %v329
        %332 = vrot.lane.b32.xlu0 %v331, 96
        %v333 = vpop.permute.xlu0 %332
        %v336 = vsel %vm239, %v312, %v319
        %v338 = vsel %vm243, %v336, %v326
        %v340 = vsel %vm246, %v338, %v333
        %s342 = scalar_lea.vmem %s173, 96 [#allocation2]
        %v343 = vld [vmem:[%s342] sm:$0xf]
        %v344 = vld [vmem:[%s342 + $0x4] sm:$0xf]
        %s345 = scalar_lea.vmem %s173, 104 [#allocation2]
        %v346 = vld [vmem:[%s345] sm:$0xf]
        %v347 = vld [vmem:[%s345 + $0x4] sm:$0xf]
        %s348 = scalar_lea.vmem %s173, 112 [#allocation2]
        %v349 = vld [vmem:[%s348] sm:$0xf]
        %v350 = vld [vmem:[%s348 + $0x4] sm:$0xf]
        %s351 = scalar_lea.vmem %s173, 120 [#allocation2]
        %v352 = vld [vmem:[%s351] sm:$0xf]
        %v353 = vld [vmem:[%s351 + $0x4] sm:$0xf]
        %v356 = vunpack.c.l.b16 %v343
        %v357 = vunpack.c.l.b16 %v344
        %v358 = vpack.c.b16 %v357, %v356
        %v361 = vunpack.c.l.b16 %v346
        %v362 = vunpack.c.l.b16 %v347
        %v363 = vpack.c.b16 %v362, %v361
        %364 = vrot.lane.b32.xlu0 %v363, 32
        %v365 = vpop.permute.xlu0 %364
        %v368 = vunpack.c.l.b16 %v349
        %v369 = vunpack.c.l.b16 %v350
        %v370 = vpack.c.b16 %v369, %v368
        %371 = vrot.lane.b32.xlu0 %v370, 64
        %v372 = vpop.permute.xlu0 %371
        %v375 = vunpack.c.l.b16 %v352
        %v376 = vunpack.c.l.b16 %v353
        %v377 = vpack.c.b16 %v376, %v375
        %378 = vrot.lane.b32.xlu0 %v377, 96
        %v379 = vpop.permute.xlu0 %378
        %v382 = vsel %vm239, %v358, %v365
        %v384 = vsel %vm243, %v382, %v372
        %v386 = vsel %vm246, %v384, %v379
        %v388 = vld [vmem:[#allocation5] sm:$0xf]
        %v389 = vld [vmem:[#allocation5 + $0x4] sm:$0xf]
        %v390 = vld [vmem:[#allocation5 + $0x8] sm:$0xf]
        %v391 = vld [vmem:[#allocation5 + $0xc] sm:$0xf]
        %v392 = vld [vmem:[#allocation5 + $0x10] sm:$0xf]
        %v393 = vld [vmem:[#allocation5 + $0x14] sm:$0xf]
        %v394 = vld [vmem:[#allocation5 + $0x18] sm:$0xf]
        %v395 = vld [vmem:[#allocation5 + $0x1c] sm:$0xf]
        %v396 = vld [vmem:[#allocation5 + $0x20] sm:$0xf]
        %v397 = vld [vmem:[#allocation5 + $0x24] sm:$0xf]
        %v398 = vld [vmem:[#allocation5 + $0x28] sm:$0xf]
        %v399 = vld [vmem:[#allocation5 + $0x2c] sm:$0xf]
        %v400 = vld [vmem:[#allocation5 + $0x30] sm:$0xf]
        %v401 = vld [vmem:[#allocation5 + $0x34] sm:$0xf]
        %v402 = vld [vmem:[#allocation5 + $0x38] sm:$0xf]
        %v403 = vld [vmem:[#allocation5 + $0x3c] sm:$0xf]
        %v420 = vunpack.c.l.b16 %v388
        %v421 = vunpack.c.l.b16 %v389
        %v422 = vunpack.c.l.b16 %v390
        %v423 = vunpack.c.l.b16 %v391
        %v424 = vunpack.c.l.b16 %v392
        %v425 = vunpack.c.l.b16 %v393
        %v426 = vunpack.c.l.b16 %v394
        %v427 = vunpack.c.l.b16 %v395
        %v428 = vunpack.c.l.b16 %v396
        %v429 = vunpack.c.l.b16 %v397
        %v430 = vunpack.c.l.b16 %v398
        %v431 = vunpack.c.l.b16 %v399
        %v432 = vunpack.c.l.b16 %v400
        %v433 = vunpack.c.l.b16 %v401
        %v434 = vunpack.c.l.b16 %v402
        %v435 = vunpack.c.l.b16 %v403
        %v436 = vpack.c.b16 %v421, %v420
        %v437 = vpack.c.b16 %v423, %v422
        %v438 = vpack.c.b16 %v425, %v424
        %v439 = vpack.c.b16 %v427, %v426
        %v440 = vpack.c.b16 %v429, %v428
        %v441 = vpack.c.b16 %v431, %v430
        %v442 = vpack.c.b16 %v433, %v432
        %v443 = vpack.c.b16 %v435, %v434
        %452 = vmatpush.bf16.msra.mxu0 %v443
        %453 = vmatpush.bf16.msra.mxu0 %v442
        %454 = vmatpush.bf16.msra.mxu0 %v441
        %455 = vmatpush.bf16.msra.mxu0 %v440
        %456 = vmatpush.bf16.msra.mxu0 %v439
        %457 = vmatpush.bf16.msra.mxu0 %v438
        %458 = vmatpush.bf16.msra.mxu0 %v437
        %459 = vmatpush.bf16.msra.mxu0 %v436
        %460 = vmatmul.bf16.gmra.mxu0 %v248
        %v461 = vpop.f32.mrf.mxu0
        %v462 = vadd.f32 0.0, %v461
        %v463 = vpop.f32.mrf.mxu0
        %v464 = vadd.f32 0.0, %v463
        %465 = vmatmul.bf16.gmra.mxu0 %v294
        %v466 = vpop.f32.mrf.mxu0
        %v467 = vadd.f32 0.0, %v466
        %v468 = vpop.f32.mrf.mxu0
        %v469 = vadd.f32 0.0, %v468
        %470 = vmatmul.bf16.gmra.mxu0 %v340
        %v471 = vpop.f32.mrf.mxu0
        %v472 = vadd.f32 0.0, %v471
        %v473 = vpop.f32.mrf.mxu0
        %v474 = vadd.f32 0.0, %v473
        %475 = vmatmul.bf16.gmra.mxu0 %v386
        %v476 = vpop.f32.mrf.mxu0
        %v477 = vadd.f32 0.0, %v476
        %v478 = vpop.f32.mrf.mxu0
        %v479 = vadd.f32 0.0, %v478
        %480 = vdwg.mxu0
        %v481 = vpack.c.bf16 %v462, %v462
        %v482 = vpack.c.bf16 %v464, %v464
        %483 = vst [vmem:[%s199] sm:$0xf] %v481
        %484 = vst [vmem:[%s199 + $0x4] sm:$0xf] %v482
        %v485 = vpack.c.bf16 %v467, %v467
        %v486 = vpack.c.bf16 %v469, %v469
        %s487 = scalar_lea.vmem %s199, 8 [#allocation7]
        %488 = vst [vmem:[%s487] sm:$0xf] %v485
        %489 = vst [vmem:[%s487 + $0x4] sm:$0xf] %v486
        %v490 = vpack.c.bf16 %v472, %v472
        %v491 = vpack.c.bf16 %v474, %v474
        %s492 = scalar_lea.vmem %s199, 16 [#allocation7]
        %493 = vst [vmem:[%s492] sm:$0xf] %v490
        %494 = vst [vmem:[%s492 + $0x4] sm:$0xf] %v491
        %v495 = vpack.c.bf16 %v477, %v477
        %v496 = vpack.c.bf16 %v479, %v479
        %s497 = scalar_lea.vmem %s199, 24 [#allocation7]
        %498 = vst [vmem:[%s497] sm:$0xf] %v495
        %499 = vst [vmem:[%s497 + $0x4] sm:$0xf] %v496
        %s500 = sand.u32 %s91, 1
        %s501 = scalar_lea.sflag [#allocation4], %s500
        %s502 = sand.u32 %s91, 1
        %s503 = smul.addr %s502, 32
        %s504 = scalar_lea.vmem [#allocation7], %s503
        // Predicated region
        $region37: #{tpu_custom_call.1} parent=27 // pred_check
          %p505 = pneg %p101
        $region38: #{tpu_custom_call.1} parent=27 // pred_check_branch
          %507 = sbr.rel (%p505) target = $region40
        $region39: #{tpu_custom_call.1} parent=27 // pred_region
          %s508 = smul.u32 4, %s25
          %510 = vsyncadd %s501, 0
          %s511 = smul.addr %s508, 2
          %s512 = smul.addr %s24, 8
          %s513 = sadd.s32 %s511, %s512
          %s514 = smul.addr %s513, 4
          %s515 = scalar_lea.hbm %s2, %s514
          %s516 = sshll.u32 %s504, 4
          %s517 = int_to_ptr.vmem [resolvable:$true] %s516
          %s518 = sshll.u32 %s515, 4
          %s519 = int_to_ptr.hbm [resolvable:$true] %s518
          %524 = dma.vmem_to_hbm [thread:$0]  %s517, 512, %s519, %s501, 64, 64, 4
        $region40: #{tpu_custom_call.1} parent=27 // pred_fallthru
          _
      $region28: #{tpu_custom_call.1} parent=5 // pred_fallthru
        _
      %p525 = scmp.le.s32.totalorder 2, %s15
      // Predicated region
      $region41: #{tpu_custom_call.1} parent=5 // pred_check
        %p526 = pneg %p525
      $region42: #{tpu_custom_call.1} parent=5 // pred_check_branch
        %528 = sbr.rel (%p526) target = $region44
      $region43: #{tpu_custom_call.1} parent=5 // pred_region
        %s529 = ssub.s32 %s15, 2
        // Predicated region
        $region45: #{tpu_custom_call.1} parent=43 // pred_check
          %p530 = pneg %p107
        $region46: #{tpu_custom_call.1} parent=43 // pred_check_branch
          %532 = sbr.rel (%p530) target = $region48
        $region47: #{tpu_custom_call.1} parent=43 // pred_region
          %s533 = sand.u32 %s92, 1
          %s534 = scalar_lea.sflag [#allocation4], %s533
          %s535 = sand.u32 %s92, 1
          %s536 = smul.addr %s535, 32
          %s537 = scalar_lea.vmem [#allocation7], %s536
          %539 = dma.done %s534, 512
        $region48: #{tpu_custom_call.1} parent=43 // pred_fallthru
          _
      $region44: #{tpu_custom_call.1} parent=5 // pred_fallthru
        _
    $region6: #{tpu_custom_call.1} parent=1 // loop_footer
      %s19 = sadd.s32 1, %s15
    $region7: #{tpu_custom_call.1} parent=1 // loop_footer_branch
      %14 = sbr.rel target = $region3
    $region8: #{tpu_custom_call.1} parent=1 // loop_exit
      _
    %540 = vsyncpa [#allocation3], 1
    %s541 = scalar_lea.sflag [#allocation3], 1
    %542 = vsyncpa %s541, 1
    %543 = vsyncpa [#allocation6], 1
    %544 = vsyncpa [#allocation4], 1
    %s545 = scalar_lea.sflag [#allocation4], 1
    %546 = vsyncpa %s545, 1

</llo_original>
